<compile_context>
chip_gen: v7x
topology: tpu7x:2x2x1
jax: 0.10.0
libtpu: 0.0.40
codegen_flags: <defaults>
</compile_context>

<pallas_src>
import jax
import jax.numpy as jnp
from jax import lax
from jax.experimental import pallas as pl
from jax.experimental.pallas import tpu as pltpu

LANE = 128
SUBLANE = 8
NEG_SLOPE = 0.01   # nn.LeakyReLU default negative_slope
BN_EPS = 1e-5      # nn.BatchNorm1d default eps


def _round_up(n, m):
    return ((n + m - 1) // m) * m


# --------------------------------------------------------------------------- #
# Kernel: 6 chained (matmul + bias) with LeakyReLU between them.
# x_ref is a (TB, Fp) bf16 batch tile; weights are bf16, biases f32 rows.
# --------------------------------------------------------------------------- #
def dnn_kernel(x_ref, w0, b0, w1, b1, w2, b2, w3, b3, w4, b4, w5, b5, out_ref):
    def lrelu(h):
        return jnp.where(h >= 0, h, NEG_SLOPE * h)

    # Layer 0 (BN folded into w0/b0): bf16 MXU matmul, f32 accumulate/epilogue.
    h = jnp.dot(x_ref[...], w0[...], preferred_element_type=jnp.float32) + b0[...]
    h = lrelu(h)

    # Layers 1..4 (BN folded).
    for w, b in ((w1, b1), (w2, b2), (w3, b3), (w4, b4)):
        h = jnp.dot(h.astype(jnp.bfloat16), w[...],
                    preferred_element_type=jnp.float32) + b[...]
        h = lrelu(h)

    # Final Linear(hidden -> num_classes), lane-dense padded output.
    out_ref[...] = jnp.dot(h.astype(jnp.bfloat16), w5[...],
                           preferred_element_type=jnp.float32) + b5[...]


# --------------------------------------------------------------------------- #
# Parameter prep: fold eval-BN into Linear, pad to 128 lanes, cast W to bf16.
# --------------------------------------------------------------------------- #
def fold_and_pad_params(params):
    (w0, b0, wmid, bmid, wout, bout, gamma, beta, mean, var) = params
    F, H = w0.shape
    C = wout.shape[1]
    Fp, Hp, Cp = _round_up(F, LANE), _round_up(H, LANE), _round_up(C, LANE)

    def fold(w, b, i):
        s = gamma[i] * lax.rsqrt(var[i] + BN_EPS)          # [H]
        return w * s[None, :], (b.reshape(-1) - mean[i]) * s + beta[i]

    def pad(w, b, in_p, out_p):
        wp = jnp.zeros((in_p, out_p), jnp.float32)
        wp = wp.at[:w.shape[0], :w.shape[1]].set(w)
        bp = jnp.zeros((1, out_p), jnp.float32)
        bp = bp.at[0, :b.reshape(-1).shape[0]].set(b.reshape(-1))
        return wp.astype(jnp.bfloat16), bp                 # weights bf16, bias f32

    layers = []
    w, b = fold(w0, b0, 0)
    layers.append(pad(w, b, Fp, Hp))
    for i in range(4):
        w, b = fold(wmid[i], bmid[i], i + 1)
        layers.append(pad(w, b, Hp, Hp))
    layers.append(pad(wout, bout, Hp, Cp))                 # no BN on final layer
    return layers, (Fp, Hp, Cp)


# --------------------------------------------------------------------------- #
# Wrapper: pad batch, build batch grid, call the kernel, slice padding away.
# --------------------------------------------------------------------------- #
def dnn_forward(x, params, *, block_b=512):
    layers, (Fp, _, Cp) = fold_and_pad_params(params)
    B, F = x.shape
    C = params[5].shape[-1]                                # bout -> num_classes

    TB = min(block_b, _round_up(B, SUBLANE))               # batch tile (mult of 8)
    Bp = _round_up(B, TB)

    xp = jnp.zeros((Bp, Fp), jnp.bfloat16)
    xp = xp.at[:B, :F].set(x.astype(jnp.bfloat16))

    flat_params = []
    weight_specs = []
    for w, b in layers:
        flat_params += [w, b]
        # Weights/biases: full-extent blocks, constant index map -> VMEM-resident
        # across all batch tiles.
        weight_specs.append(pl.BlockSpec(w.shape, lambda i: (0, 0)))
        weight_specs.append(pl.BlockSpec(b.shape, lambda i: (0, 0)))

    out = pl.pallas_call(
        dnn_kernel,
        out_shape=jax.ShapeDtypeStruct((Bp, Cp), jnp.float32),
        grid_spec=pltpu.PrefetchScalarGridSpec(
            num_scalar_prefetch=0,
            grid=(Bp // TB,),
            in_specs=[pl.BlockSpec((TB, Fp), lambda i: (i, 0))] + weight_specs,
            out_specs=pl.BlockSpec((TB, Cp), lambda i: (i, 0)),
        ),
        compiler_params=pltpu.CompilerParams(
            dimension_semantics=("parallel",)),
    )(xp, *flat_params)

    return out[:B, :C]


# --------------------------------------------------------------------------- #
# Deterministic init matching DNN.init_weight: xavier_normal_ W, zero bias,
# BatchNorm1d defaults (gamma=1, beta=0, running_mean=0, running_var=1).
# Weights are generated directly as [in, out] (transposed vs torch's [out, in]).
# --------------------------------------------------------------------------- #
def make_params(key, input_size, hidden_size, num_classes):
    def xavier_normal(k, fan_in, fan_out):
        std = (2.0 / (fan_in + fan_out)) ** 0.5
        return std * jax.random.normal(k, (fan_in, fan_out), dtype=jnp.float32)

    ks = jax.random.split(key, 6)
    w0 = xavier_normal(ks[0], input_size, hidden_size)
    b0 = jnp.zeros((1, hidden_size), jnp.float32)
    wmid = jnp.stack([xavier_normal(ks[i + 1], hidden_size, hidden_size)
                      for i in range(4)], axis=0)          # [4, H, H]
    bmid = jnp.zeros((4, hidden_size), jnp.float32)
    wout = xavier_normal(ks[5], hidden_size, num_classes)
    bout = jnp.zeros((1, num_classes), jnp.float32)

    gamma = jnp.ones((5, hidden_size), jnp.float32)
    beta = jnp.zeros((5, hidden_size), jnp.float32)
    mean = jnp.zeros((5, hidden_size), jnp.float32)
    var = jnp.ones((5, hidden_size), jnp.float32)
    return (w0, b0, wmid, bmid, wout, bout, gamma, beta, mean, var)


def reference_forward(x, params):
    (w0, b0, wmid, bmid, wout, bout, gamma, beta, mean, var) = params

    def bn_lrelu(h, i):
        h = (h - mean[i]) / jnp.sqrt(var[i] + BN_EPS) * gamma[i] + beta[i]
        return jnp.where(h >= 0, h, NEG_SLOPE * h)

    h = x @ w0 + b0
    h = bn_lrelu(h, 0)
    for i in range(4):
        h = h @ wmid[i] + bmid[i]
        h = bn_lrelu(h, i + 1)
    return h @ wout + bout


if __name__ == "__main__":
    input_size, hidden_size, num_classes = 32, 32, 2
    batch = 16

    key = jax.random.PRNGKey(0)
    kx, kp = jax.random.split(key)
    x = jax.random.normal(kx, (batch, input_size), dtype=jnp.float32)
    params = make_params(kp, input_size, hidden_size, num_classes)

    out = jax.block_until_ready(dnn_forward(x, params))
    ref = reference_forward(x, params)

    assert out.shape == (batch, num_classes)
    # bf16 matmul operands -> small rounding error vs f32 reference.
    assert jnp.allclose(out, ref, atol=5e-2, rtol=5e-2)
    print("KERNEL_OK")
</pallas_src>

<mosaic_0001>
module attributes {stable_mosaic.version = 11 : i64} {
  func.func @dnn_kernel(%arg0: i32, %arg1: memref<16x128xbf16, #tpu.memory_space<vmem>>, %arg2: memref<128x128xbf16, #tpu.memory_space<vmem>>, %arg3: memref<1x128xf32, #tpu.memory_space<vmem>>, %arg4: memref<128x128xbf16, #tpu.memory_space<vmem>>, %arg5: memref<1x128xf32, #tpu.memory_space<vmem>>, %arg6: memref<128x128xbf16, #tpu.memory_space<vmem>>, %arg7: memref<1x128xf32, #tpu.memory_space<vmem>>, %arg8: memref<128x128xbf16, #tpu.memory_space<vmem>>, %arg9: memref<1x128xf32, #tpu.memory_space<vmem>>, %arg10: memref<128x128xbf16, #tpu.memory_space<vmem>>, %arg11: memref<1x128xf32, #tpu.memory_space<vmem>>, %arg12: memref<128x128xbf16, #tpu.memory_space<vmem>>, %arg13: memref<1x128xf32, #tpu.memory_space<vmem>>, %arg14: memref<16x128xf32, #tpu.memory_space<vmem>>) attributes {dimension_semantics = [#tpu.dimension_semantics<parallel>], iteration_bounds = array<i64: 1>, scalar_prefetch = 0 : i64, scratch_operands = 0 : i64, tpu.core_type = #tpu.core_type<tc>, window_params = [{transform_indices = @transform_0, window_bounds = array<i64: 16, 128>}, {pipeline_mode = #tpu.pipeline_mode<synchronous>, transform_indices = @transform_1, window_bounds = array<i64: 128, 128>}, {pipeline_mode = #tpu.pipeline_mode<synchronous>, transform_indices = @transform_2, window_bounds = array<i64: 1, 128>}, {pipeline_mode = #tpu.pipeline_mode<synchronous>, transform_indices = @transform_3, window_bounds = array<i64: 128, 128>}, {pipeline_mode = #tpu.pipeline_mode<synchronous>, transform_indices = @transform_4, window_bounds = array<i64: 1, 128>}, {pipeline_mode = #tpu.pipeline_mode<synchronous>, transform_indices = @transform_5, window_bounds = array<i64: 128, 128>}, {pipeline_mode = #tpu.pipeline_mode<synchronous>, transform_indices = @transform_6, window_bounds = array<i64: 1, 128>}, {pipeline_mode = #tpu.pipeline_mode<synchronous>, transform_indices = @transform_7, window_bounds = array<i64: 128, 128>}, {pipeline_mode = #tpu.pipeline_mode<synchronous>, transform_indices = @transform_8, window_bounds = array<i64: 1, 128>}, {pipeline_mode = #tpu.pipeline_mode<synchronous>, transform_indices = @transform_9, window_bounds = array<i64: 128, 128>}, {pipeline_mode = #tpu.pipeline_mode<synchronous>, transform_indices = @transform_10, window_bounds = array<i64: 1, 128>}, {pipeline_mode = #tpu.pipeline_mode<synchronous>, transform_indices = @transform_11, window_bounds = array<i64: 128, 128>}, {pipeline_mode = #tpu.pipeline_mode<synchronous>, transform_indices = @transform_12, window_bounds = array<i64: 1, 128>}, {transform_indices = @transform_13, window_bounds = array<i64: 16, 128>}]} {
    %c0 = arith.constant 0 : index
    %c0_0 = arith.constant 0 : index
    %0 = vector.load %arg1[%c0, %c0_0] : memref<16x128xbf16, #tpu.memory_space<vmem>>, vector<16x128xbf16>
    %c0_1 = arith.constant 0 : index
    %c0_2 = arith.constant 0 : index
    %1 = vector.load %arg2[%c0_1, %c0_2] : memref<128x128xbf16, #tpu.memory_space<vmem>>, vector<128x128xbf16>
    %cst = arith.constant dense<0.000000e+00> : vector<16x128xf32>
    %2 = tpu.matmul %0, %1, %cst {dimension_numbers = #tpu.dot_dimension_numbers<[1], [0], [0], [1], [0, 0, 1, 1], [], []>} : vector<16x128xbf16>, vector<128x128xbf16>, vector<16x128xf32> -> vector<16x128xf32>
    %c0_3 = arith.constant 0 : index
    %c0_4 = arith.constant 0 : index
    %3 = vector.load %arg3[%c0_3, %c0_4] : memref<1x128xf32, #tpu.memory_space<vmem>>, vector<1x128xf32>
    %4 = vector.broadcast %3 : vector<1x128xf32> to vector<16x128xf32>
    %5 = arith.addf %2, %4 : vector<16x128xf32>
    %cst_5 = arith.constant 0.000000e+00 : f32
    %6 = vector.broadcast %cst_5 : f32 to vector<16x128xf32>
    %7 = arith.cmpf oge, %5, %6 : vector<16x128xf32>
    %cst_6 = arith.constant 0.00999999977 : f32
    %8 = vector.broadcast %cst_6 : f32 to vector<16x128xf32>
    %9 = arith.mulf %8, %5 : vector<16x128xf32>
    %10 = arith.select %7, %5, %9 : vector<16x128xi1>, vector<16x128xf32>
    %11 = arith.truncf %10 : vector<16x128xf32> to vector<16x128xbf16>
    %c0_7 = arith.constant 0 : index
    %c0_8 = arith.constant 0 : index
    %12 = vector.load %arg4[%c0_7, %c0_8] : memref<128x128xbf16, #tpu.memory_space<vmem>>, vector<128x128xbf16>
    %cst_9 = arith.constant dense<0.000000e+00> : vector<16x128xf32>
    %13 = tpu.matmul %11, %12, %cst_9 {dimension_numbers = #tpu.dot_dimension_numbers<[1], [0], [0], [1], [0, 0, 1, 1], [], []>} : vector<16x128xbf16>, vector<128x128xbf16>, vector<16x128xf32> -> vector<16x128xf32>
    %c0_10 = arith.constant 0 : index
    %c0_11 = arith.constant 0 : index
    %14 = vector.load %arg5[%c0_10, %c0_11] : memref<1x128xf32, #tpu.memory_space<vmem>>, vector<1x128xf32>
    %15 = vector.broadcast %14 : vector<1x128xf32> to vector<16x128xf32>
    %16 = arith.addf %13, %15 : vector<16x128xf32>
    %cst_12 = arith.constant 0.000000e+00 : f32
    %17 = vector.broadcast %cst_12 : f32 to vector<16x128xf32>
    %18 = arith.cmpf oge, %16, %17 : vector<16x128xf32>
    %cst_13 = arith.constant 0.00999999977 : f32
    %19 = vector.broadcast %cst_13 : f32 to vector<16x128xf32>
    %20 = arith.mulf %19, %16 : vector<16x128xf32>
    %21 = arith.select %18, %16, %20 : vector<16x128xi1>, vector<16x128xf32>
    %22 = arith.truncf %21 : vector<16x128xf32> to vector<16x128xbf16>
    %c0_14 = arith.constant 0 : index
    %c0_15 = arith.constant 0 : index
    %23 = vector.load %arg6[%c0_14, %c0_15] : memref<128x128xbf16, #tpu.memory_space<vmem>>, vector<128x128xbf16>
    %cst_16 = arith.constant dense<0.000000e+00> : vector<16x128xf32>
    %24 = tpu.matmul %22, %23, %cst_16 {dimension_numbers = #tpu.dot_dimension_numbers<[1], [0], [0], [1], [0, 0, 1, 1], [], []>} : vector<16x128xbf16>, vector<128x128xbf16>, vector<16x128xf32> -> vector<16x128xf32>
    %c0_17 = arith.constant 0 : index
    %c0_18 = arith.constant 0 : index
    %25 = vector.load %arg7[%c0_17, %c0_18] : memref<1x128xf32, #tpu.memory_space<vmem>>, vector<1x128xf32>
    %26 = vector.broadcast %25 : vector<1x128xf32> to vector<16x128xf32>
    %27 = arith.addf %24, %26 : vector<16x128xf32>
    %cst_19 = arith.constant 0.000000e+00 : f32
    %28 = vector.broadcast %cst_19 : f32 to vector<16x128xf32>
    %29 = arith.cmpf oge, %27, %28 : vector<16x128xf32>
    %cst_20 = arith.constant 0.00999999977 : f32
    %30 = vector.broadcast %cst_20 : f32 to vector<16x128xf32>
    %31 = arith.mulf %30, %27 : vector<16x128xf32>
    %32 = arith.select %29, %27, %31 : vector<16x128xi1>, vector<16x128xf32>
    %33 = arith.truncf %32 : vector<16x128xf32> to vector<16x128xbf16>
    %c0_21 = arith.constant 0 : index
    %c0_22 = arith.constant 0 : index
    %34 = vector.load %arg8[%c0_21, %c0_22] : memref<128x128xbf16, #tpu.memory_space<vmem>>, vector<128x128xbf16>
    %cst_23 = arith.constant dense<0.000000e+00> : vector<16x128xf32>
    %35 = tpu.matmul %33, %34, %cst_23 {dimension_numbers = #tpu.dot_dimension_numbers<[1], [0], [0], [1], [0, 0, 1, 1], [], []>} : vector<16x128xbf16>, vector<128x128xbf16>, vector<16x128xf32> -> vector<16x128xf32>
    %c0_24 = arith.constant 0 : index
    %c0_25 = arith.constant 0 : index
    %36 = vector.load %arg9[%c0_24, %c0_25] : memref<1x128xf32, #tpu.memory_space<vmem>>, vector<1x128xf32>
    %37 = vector.broadcast %36 : vector<1x128xf32> to vector<16x128xf32>
    %38 = arith.addf %35, %37 : vector<16x128xf32>
    %cst_26 = arith.constant 0.000000e+00 : f32
    %39 = vector.broadcast %cst_26 : f32 to vector<16x128xf32>
    %40 = arith.cmpf oge, %38, %39 : vector<16x128xf32>
    %cst_27 = arith.constant 0.00999999977 : f32
    %41 = vector.broadcast %cst_27 : f32 to vector<16x128xf32>
    %42 = arith.mulf %41, %38 : vector<16x128xf32>
    %43 = arith.select %40, %38, %42 : vector<16x128xi1>, vector<16x128xf32>
    %44 = arith.truncf %43 : vector<16x128xf32> to vector<16x128xbf16>
    %c0_28 = arith.constant 0 : index
    %c0_29 = arith.constant 0 : index
    %45 = vector.load %arg10[%c0_28, %c0_29] : memref<128x128xbf16, #tpu.memory_space<vmem>>, vector<128x128xbf16>
    %cst_30 = arith.constant dense<0.000000e+00> : vector<16x128xf32>
    %46 = tpu.matmul %44, %45, %cst_30 {dimension_numbers = #tpu.dot_dimension_numbers<[1], [0], [0], [1], [0, 0, 1, 1], [], []>} : vector<16x128xbf16>, vector<128x128xbf16>, vector<16x128xf32> -> vector<16x128xf32>
    %c0_31 = arith.constant 0 : index
    %c0_32 = arith.constant 0 : index
    %47 = vector.load %arg11[%c0_31, %c0_32] : memref<1x128xf32, #tpu.memory_space<vmem>>, vector<1x128xf32>
    %48 = vector.broadcast %47 : vector<1x128xf32> to vector<16x128xf32>
    %49 = arith.addf %46, %48 : vector<16x128xf32>
    %cst_33 = arith.constant 0.000000e+00 : f32
    %50 = vector.broadcast %cst_33 : f32 to vector<16x128xf32>
    %51 = arith.cmpf oge, %49, %50 : vector<16x128xf32>
    %cst_34 = arith.constant 0.00999999977 : f32
    %52 = vector.broadcast %cst_34 : f32 to vector<16x128xf32>
    %53 = arith.mulf %52, %49 : vector<16x128xf32>
    %54 = arith.select %51, %49, %53 : vector<16x128xi1>, vector<16x128xf32>
    %55 = arith.truncf %54 : vector<16x128xf32> to vector<16x128xbf16>
    %c0_35 = arith.constant 0 : index
    %c0_36 = arith.constant 0 : index
    %56 = vector.load %arg12[%c0_35, %c0_36] : memref<128x128xbf16, #tpu.memory_space<vmem>>, vector<128x128xbf16>
    %cst_37 = arith.constant dense<0.000000e+00> : vector<16x128xf32>
    %57 = tpu.matmul %55, %56, %cst_37 {dimension_numbers = #tpu.dot_dimension_numbers<[1], [0], [0], [1], [0, 0, 1, 1], [], []>} : vector<16x128xbf16>, vector<128x128xbf16>, vector<16x128xf32> -> vector<16x128xf32>
    %c0_38 = arith.constant 0 : index
    %c0_39 = arith.constant 0 : index
    %58 = vector.load %arg13[%c0_38, %c0_39] : memref<1x128xf32, #tpu.memory_space<vmem>>, vector<1x128xf32>
    %59 = vector.broadcast %58 : vector<1x128xf32> to vector<16x128xf32>
    %60 = arith.addf %57, %59 : vector<16x128xf32>
    %c0_40 = arith.constant 0 : index
    %c0_41 = arith.constant 0 : index
    %61 = vector.load %arg14[%c0_40, %c0_41] : memref<16x128xf32, #tpu.memory_space<vmem>>, vector<16x128xf32>
    tpu.vector_store %arg14[%c0_40, %c0_41], %60 {strides = array<i32>} : memref<16x128xf32, #tpu.memory_space<vmem>>, vector<16x128xf32>,
    return
  }
  func.func @transform_0(%arg0: i32) -> (i32, i32) {
    %c0_i32 = arith.constant 0 : i32
    %c0_i32_0 = arith.constant 0 : i32
    return %arg0, %c0_i32 : i32, i32
  }
  func.func @transform_1(%arg0: i32) -> (i32, i32) {
    %c0_i32 = arith.constant 0 : i32
    %c0_i32_0 = arith.constant 0 : i32
    %c0_i32_1 = arith.constant 0 : i32
    return %c0_i32, %c0_i32_0 : i32, i32
  }
  func.func @transform_2(%arg0: i32) -> (i32, i32) {
    %c0_i32 = arith.constant 0 : i32
    %c0_i32_0 = arith.constant 0 : i32
    %c0_i32_1 = arith.constant 0 : i32
    return %c0_i32, %c0_i32_0 : i32, i32
  }
  func.func @transform_3(%arg0: i32) -> (i32, i32) {
    %c0_i32 = arith.constant 0 : i32
    %c0_i32_0 = arith.constant 0 : i32
    %c0_i32_1 = arith.constant 0 : i32
    return %c0_i32, %c0_i32_0 : i32, i32
  }
  func.func @transform_4(%arg0: i32) -> (i32, i32) {
    %c0_i32 = arith.constant 0 : i32
    %c0_i32_0 = arith.constant 0 : i32
    %c0_i32_1 = arith.constant 0 : i32
    return %c0_i32, %c0_i32_0 : i32, i32
  }
  func.func @transform_5(%arg0: i32) -> (i32, i32) {
    %c0_i32 = arith.constant 0 : i32
    %c0_i32_0 = arith.constant 0 : i32
    %c0_i32_1 = arith.constant 0 : i32
    return %c0_i32, %c0_i32_0 : i32, i32
  }
  func.func @transform_6(%arg0: i32) -> (i32, i32) {
    %c0_i32 = arith.constant 0 : i32
    %c0_i32_0 = arith.constant 0 : i32
    %c0_i32_1 = arith.constant 0 : i32
    return %c0_i32, %c0_i32_0 : i32, i32
  }
  func.func @transform_7(%arg0: i32) -> (i32, i32) {
    %c0_i32 = arith.constant 0 : i32
    %c0_i32_0 = arith.constant 0 : i32
    %c0_i32_1 = arith.constant 0 : i32
    return %c0_i32, %c0_i32_0 : i32, i32
  }
  func.func @transform_8(%arg0: i32) -> (i32, i32) {
    %c0_i32 = arith.constant 0 : i32
    %c0_i32_0 = arith.constant 0 : i32
    %c0_i32_1 = arith.constant 0 : i32
    return %c0_i32, %c0_i32_0 : i32, i32
  }
  func.func @transform_9(%arg0: i32) -> (i32, i32) {
    %c0_i32 = arith.constant 0 : i32
    %c0_i32_0 = arith.constant 0 : i32
    %c0_i32_1 = arith.constant 0 : i32
    return %c0_i32, %c0_i32_0 : i32, i32
  }
  func.func @transform_10(%arg0: i32) -> (i32, i32) {
    %c0_i32 = arith.constant 0 : i32
    %c0_i32_0 = arith.constant 0 : i32
    %c0_i32_1 = arith.constant 0 : i32
    return %c0_i32, %c0_i32_0 : i32, i32
  }
  func.func @transform_11(%arg0: i32) -> (i32, i32) {
    %c0_i32 = arith.constant 0 : i32
    %c0_i32_0 = arith.constant 0 : i32
    %c0_i32_1 = arith.constant 0 : i32
    return %c0_i32, %c0_i32_0 : i32, i32
  }
  func.func @transform_12(%arg0: i32) -> (i32, i32) {
    %c0_i32 = arith.constant 0 : i32
    %c0_i32_0 = arith.constant 0 : i32
    %c0_i32_1 = arith.constant 0 : i32
    return %c0_i32, %c0_i32_0 : i32, i32
  }
  func.func @transform_13(%arg0: i32) -> (i32, i32) {
    %c0_i32 = arith.constant 0 : i32
    %c0_i32_0 = arith.constant 0 : i32
    return %arg0, %c0_i32 : i32, i32
  }
}

</mosaic_0001>

<llo_original>
// kernel: tpu_custom_call.1
$region0: #{tpu_custom_call.1}
  #allocation0 [shape = 'u32[]', space=smem, size = 0x4, offset = 0x4, fixed_abs, tag = 'smem constant byte address 0x4 - core index']
  #allocation1 [shape = 'u32[144,128]{1,0:T(1,128)}', space=vmem, size = 0x12000, scoped, tag = 'internal scratch']
  %s0 = inlined_call_operand.hbm [shape: bf16[16,128], index: 0, kind: input, shape index: {}]
  %s1 = inlined_call_operand.hbm [shape: bf16[128,128], index: 1, kind: input, shape index: {}]
  %s2 = inlined_call_operand.vmem [shape: f32[1,128], index: 2, kind: input, shape index: {}]
  %s3 = inlined_call_operand.hbm [shape: bf16[128,128], index: 3, kind: input, shape index: {}]
  %s4 = inlined_call_operand.vmem [shape: f32[1,128], index: 4, kind: input, shape index: {}]
  %s5 = inlined_call_operand.hbm [shape: bf16[128,128], index: 5, kind: input, shape index: {}]
  %s6 = inlined_call_operand.vmem [shape: f32[1,128], index: 6, kind: input, shape index: {}]
  %s7 = inlined_call_operand.hbm [shape: bf16[128,128], index: 7, kind: input, shape index: {}]
  %s8 = inlined_call_operand.vmem [shape: f32[1,128], index: 8, kind: input, shape index: {}]
  %s9 = inlined_call_operand.hbm [shape: bf16[128,128], index: 9, kind: input, shape index: {}]
  %s10 = inlined_call_operand.vmem [shape: f32[1,128], index: 10, kind: input, shape index: {}]
  %s11 = inlined_call_operand.hbm [shape: bf16[128,128], index: 11, kind: input, shape index: {}]
  %s12 = inlined_call_operand.vmem [shape: f32[1,128], index: 12, kind: input, shape index: {}]
  %s13 = inlined_call_operand.hbm [shape: f32[16,128], index: 13, kind: output, shape index: {}]
  %s14 = sld [smem:[#allocation0]]
  $region90: #{tpu_custom_call.1} parent=0
    _
  %s16 = ssub.s32 1, %s14
  %s17 = scalar_select 0, %s16, %s14
  $region1: #{tpu_custom_call.1} parent=0
    #allocation2 [shape = 'u8[4096]{0}', space=vmem, size = 0x1000, scoped, tag = 'input window, operand 0, single buffered']
    #allocation3 [shape = 's32[1]{0}', space=sflag, size = 0x4, scoped, tag = 'scoped memory for tpu_custom_call.1']
    #allocation4 [shape = 's32[1]{0}', space=sflag, size = 0x4, scoped, tag = 'scoped memory for tpu_custom_call.1']
    #allocation5 [shape = 'u8[32768]{0}', space=vmem, size = 0x8000, scoped, tag = 'input window, operand 1, single buffered']
    #allocation6 [shape = 's32[1]{0}', space=sflag, size = 0x4, scoped, tag = 'scoped memory for tpu_custom_call.1']
    #allocation7 [shape = 'u8[32768]{0}', space=vmem, size = 0x8000, scoped, tag = 'input window, operand 3, single buffered']
    #allocation8 [shape = 'u8[32768]{0}', space=vmem, size = 0x8000, scoped, tag = 'input window, operand 5, single buffered']
    #allocation9 [shape = 's32[1]{0}', space=sflag, size = 0x4, scoped, tag = 'scoped memory for tpu_custom_call.1']
    #allocation10 [shape = 'u8[32768]{0}', space=vmem, size = 0x8000, scoped, tag = 'input window, operand 7, single buffered']
    #allocation11 [shape = 'u8[32768]{0}', space=vmem, size = 0x8000, scoped, tag = 'input window, operand 9, single buffered']
    #allocation12 [shape = 's32[1]{0}', space=sflag, size = 0x4, scoped, tag = 'scoped memory for tpu_custom_call.1']
    #allocation13 [shape = 'u8[32768]{0}', space=vmem, size = 0x8000, scoped, tag = 'input window, operand 11, single buffered']
    #allocation14 [shape = 'u8[8192]{0}', space=vmem, size = 0x2000, scoped, tag = 'output window, operand 0, single buffered']
    %18 = vsyncpa [#allocation3], 0
    %19 = vsyncpa [#allocation6], 0
    %20 = vsyncpa [#allocation9], 0
    %21 = vsyncpa [#allocation12], 0
    %22 = vsyncpa [#allocation4], 0
    // Predicated region
    $region2: #{tpu_custom_call.1} parent=1 // pred_check
      _
    $region3: #{tpu_custom_call.1} parent=1 // pred_check_branch
      %24 = sbr.rel (0) target = $region5
    $region4: #{tpu_custom_call.1} parent=1 // pred_region
      %s26 = ssub.s32 128, 128
      %27 = vsyncadd [#allocation3], %s26
      %s28 = sshll.u32 [#allocation2], 4
      %s29 = int_to_ptr.vmem [resolvable:$true] %s28
      %34 = dma.hbm_to_vmem [thread:$0]  %s0, 128, %s29, [#allocation3], 64, 64, 4
    $region5: #{tpu_custom_call.1} parent=1 // pred_fallthru
      _
    // Predicated region
    $region6: #{tpu_custom_call.1} parent=1 // pred_check
      _
    $region7: #{tpu_custom_call.1} parent=1 // pred_check_branch
      %36 = sbr.rel (0) target = $region9
    $region8: #{tpu_custom_call.1} parent=1 // pred_region
      %s38 = ssub.s32 1024, 1024
      %39 = vsyncadd [#allocation6], %s38
      %s40 = sshll.u32 [#allocation5], 4
      %s41 = int_to_ptr.vmem [resolvable:$true] %s40
      %46 = dma.hbm_to_vmem [thread:$0]  %s1, 1024, %s41, [#allocation6], 64, 64, 4
    $region9: #{tpu_custom_call.1} parent=1 // pred_fallthru
      _
    // Predicated region
    $region10: #{tpu_custom_call.1} parent=1 // pred_check
      _
    $region11: #{tpu_custom_call.1} parent=1 // pred_check_branch
      %48 = sbr.rel (0) target = $region13
    $region12: #{tpu_custom_call.1} parent=1 // pred_region
      _
    $region13: #{tpu_custom_call.1} parent=1 // pred_fallthru
      _
    // Predicated region
    $region14: #{tpu_custom_call.1} parent=1 // pred_check
      _
    $region15: #{tpu_custom_call.1} parent=1 // pred_check_branch
      %50 = sbr.rel (0) target = $region17
    $region16: #{tpu_custom_call.1} parent=1 // pred_region
      %s52 = ssub.s32 1024, 1024
      %53 = vsyncadd [#allocation6], %s52
      %s54 = sshll.u32 [#allocation7], 4
      %s55 = int_to_ptr.vmem [resolvable:$true] %s54
      %60 = dma.hbm_to_vmem [thread:$0]  %s3, 1024, %s55, [#allocation6], 64, 64, 4
    $region17: #{tpu_custom_call.1} parent=1 // pred_fallthru
      _
    // Predicated region
    $region18: #{tpu_custom_call.1} parent=1 // pred_check
      _
    $region19: #{tpu_custom_call.1} parent=1 // pred_check_branch
      %62 = sbr.rel (0) target = $region21
    $region20: #{tpu_custom_call.1} parent=1 // pred_region
      _
    $region21: #{tpu_custom_call.1} parent=1 // pred_fallthru
      _
    // Predicated region
    $region22: #{tpu_custom_call.1} parent=1 // pred_check
      _
    $region23: #{tpu_custom_call.1} parent=1 // pred_check_branch
      %64 = sbr.rel (0) target = $region25
    $region24: #{tpu_custom_call.1} parent=1 // pred_region
      %s66 = ssub.s32 1024, 1024
      %67 = vsyncadd [#allocation9], %s66
      %s68 = sshll.u32 [#allocation8], 4
      %s69 = int_to_ptr.vmem [resolvable:$true] %s68
      %74 = dma.hbm_to_vmem [thread:$0]  %s5, 1024, %s69, [#allocation9], 64, 64, 4
    $region25: #{tpu_custom_call.1} parent=1 // pred_fallthru
      _
    // Predicated region
    $region26: #{tpu_custom_call.1} parent=1 // pred_check
      _
    $region27: #{tpu_custom_call.1} parent=1 // pred_check_branch
      %76 = sbr.rel (0) target = $region29
    $region28: #{tpu_custom_call.1} parent=1 // pred_region
      _
    $region29: #{tpu_custom_call.1} parent=1 // pred_fallthru
      _
    // Predicated region
    $region30: #{tpu_custom_call.1} parent=1 // pred_check
      _
    $region31: #{tpu_custom_call.1} parent=1 // pred_check_branch
      %78 = sbr.rel (0) target = $region33
    $region32: #{tpu_custom_call.1} parent=1 // pred_region
      %s80 = ssub.s32 1024, 1024
      %81 = vsyncadd [#allocation9], %s80
      %s82 = sshll.u32 [#allocation10], 4
      %s83 = int_to_ptr.vmem [resolvable:$true] %s82
      %88 = dma.hbm_to_vmem [thread:$0]  %s7, 1024, %s83, [#allocation9], 64, 64, 4
    $region33: #{tpu_custom_call.1} parent=1 // pred_fallthru
      _
    // Predicated region
    $region34: #{tpu_custom_call.1} parent=1 // pred_check
      _
    $region35: #{tpu_custom_call.1} parent=1 // pred_check_branch
      %90 = sbr.rel (0) target = $region37
    $region36: #{tpu_custom_call.1} parent=1 // pred_region
      _
    $region37: #{tpu_custom_call.1} parent=1 // pred_fallthru
      _
    // Predicated region
    $region38: #{tpu_custom_call.1} parent=1 // pred_check
      _
    $region39: #{tpu_custom_call.1} parent=1 // pred_check_branch
      %92 = sbr.rel (0) target = $region41
    $region40: #{tpu_custom_call.1} parent=1 // pred_region
      %s94 = ssub.s32 1024, 1024
      %95 = vsyncadd [#allocation12], %s94
      %s96 = sshll.u32 [#allocation11], 4
      %s97 = int_to_ptr.vmem [resolvable:$true] %s96
      %102 = dma.hbm_to_vmem [thread:$0]  %s9, 1024, %s97, [#allocation12], 64, 64, 4
    $region41: #{tpu_custom_call.1} parent=1 // pred_fallthru
      _
    // Predicated region
    $region42: #{tpu_custom_call.1} parent=1 // pred_check
      _
    $region43: #{tpu_custom_call.1} parent=1 // pred_check_branch
      %104 = sbr.rel (0) target = $region45
    $region44: #{tpu_custom_call.1} parent=1 // pred_region
      _
    $region45: #{tpu_custom_call.1} parent=1 // pred_fallthru
      _
    // Predicated region
    $region46: #{tpu_custom_call.1} parent=1 // pred_check
      _
    $region47: #{tpu_custom_call.1} parent=1 // pred_check_branch
      %106 = sbr.rel (0) target = $region49
    $region48: #{tpu_custom_call.1} parent=1 // pred_region
      %s108 = ssub.s32 1024, 1024
      %109 = vsyncadd [#allocation12], %s108
      %s110 = sshll.u32 [#allocation13], 4
      %s111 = int_to_ptr.vmem [resolvable:$true] %s110
      %116 = dma.hbm_to_vmem [thread:$0]  %s11, 1024, %s111, [#allocation12], 64, 64, 4
    $region49: #{tpu_custom_call.1} parent=1 // pred_fallthru
      _
    // Predicated region
    $region50: #{tpu_custom_call.1} parent=1 // pred_check
      _
    $region51: #{tpu_custom_call.1} parent=1 // pred_check_branch
      %118 = sbr.rel (0) target = $region53
    $region52: #{tpu_custom_call.1} parent=1 // pred_region
      _
    $region53: #{tpu_custom_call.1} parent=1 // pred_fallthru
      _
    // Predicated region
    $region54: #{tpu_custom_call.1} parent=1 // pred_check
      _
    $region55: #{tpu_custom_call.1} parent=1 // pred_check_branch
      %120 = sbr.rel (0) target = $region57
    $region56: #{tpu_custom_call.1} parent=1 // pred_region
      %121 = dma.done [#allocation3], 128
    $region57: #{tpu_custom_call.1} parent=1 // pred_fallthru
      _
    // Predicated region
    $region58: #{tpu_custom_call.1} parent=1 // pred_check
      _
    $region59: #{tpu_custom_call.1} parent=1 // pred_check_branch
      %123 = sbr.rel (0) target = $region61
    $region60: #{tpu_custom_call.1} parent=1 // pred_region
      %124 = dma.done [#allocation6], 1024
    $region61: #{tpu_custom_call.1} parent=1 // pred_fallthru
      _
    // Predicated region
    $region62: #{tpu_custom_call.1} parent=1 // pred_check
      _
    $region63: #{tpu_custom_call.1} parent=1 // pred_check_branch
      %126 = sbr.rel (0) target = $region65
    $region64: #{tpu_custom_call.1} parent=1 // pred_region
      %127 = dma.done [#allocation6], 1024
    $region65: #{tpu_custom_call.1} parent=1 // pred_fallthru
      _
    // Predicated region
    $region66: #{tpu_custom_call.1} parent=1 // pred_check
      _
    $region67: #{tpu_custom_call.1} parent=1 // pred_check_branch
      %129 = sbr.rel (0) target = $region69
    $region68: #{tpu_custom_call.1} parent=1 // pred_region
      %130 = dma.done [#allocation9], 1024
    $region69: #{tpu_custom_call.1} parent=1 // pred_fallthru
      _
    // Predicated region
    $region70: #{tpu_custom_call.1} parent=1 // pred_check
      _
    $region71: #{tpu_custom_call.1} parent=1 // pred_check_branch
      %132 = sbr.rel (0) target = $region73
    $region72: #{tpu_custom_call.1} parent=1 // pred_region
      %133 = dma.done [#allocation9], 1024
    $region73: #{tpu_custom_call.1} parent=1 // pred_fallthru
      _
    // Predicated region
    $region74: #{tpu_custom_call.1} parent=1 // pred_check
      _
    $region75: #{tpu_custom_call.1} parent=1 // pred_check_branch
      %135 = sbr.rel (0) target = $region77
    $region76: #{tpu_custom_call.1} parent=1 // pred_region
      %136 = dma.done [#allocation12], 1024
    $region77: #{tpu_custom_call.1} parent=1 // pred_fallthru
      _
    // Predicated region
    $region78: #{tpu_custom_call.1} parent=1 // pred_check
      _
    $region79: #{tpu_custom_call.1} parent=1 // pred_check_branch
      %138 = sbr.rel (0) target = $region81
    $region80: #{tpu_custom_call.1} parent=1 // pred_region
      %139 = dma.done [#allocation12], 1024
    $region81: #{tpu_custom_call.1} parent=1 // pred_fallthru
      _
    %v141 = vld [vmem:[#allocation2] sm:$0xf]
    %v142 = vld [vmem:[#allocation2 + $0x4] sm:$0xf]
    %v143 = vld [vmem:[#allocation5] sm:$0xf]
    %v144 = vld [vmem:[#allocation5 + $0x4] sm:$0xf]
    %v145 = vld [vmem:[#allocation5 + $0x8] sm:$0xf]
    %v146 = vld [vmem:[#allocation5 + $0xc] sm:$0xf]
    %v147 = vld [vmem:[#allocation5 + $0x10] sm:$0xf]
    %v148 = vld [vmem:[#allocation5 + $0x14] sm:$0xf]
    %v149 = vld [vmem:[#allocation5 + $0x18] sm:$0xf]
    %v150 = vld [vmem:[#allocation5 + $0x1c] sm:$0xf]
    %v151 = vld [vmem:[#allocation5 + $0x20] sm:$0xf]
    %v152 = vld [vmem:[#allocation5 + $0x24] sm:$0xf]
    %v153 = vld [vmem:[#allocation5 + $0x28] sm:$0xf]
    %v154 = vld [vmem:[#allocation5 + $0x2c] sm:$0xf]
    %v155 = vld [vmem:[#allocation5 + $0x30] sm:$0xf]
    %v156 = vld [vmem:[#allocation5 + $0x34] sm:$0xf]
    %v157 = vld [vmem:[#allocation5 + $0x38] sm:$0xf]
    %v158 = vld [vmem:[#allocation5 + $0x3c] sm:$0xf]
    %v159 = vld [vmem:[%s2] sm:$0x1]
    %v161 = vlaneseq
    %v162 = vshrl.u32 %v161, 7
    %v163 = vsub.s32 0, %v162
    %v164 = vrot.slane %v159, %v163
    %v168 = vunpack.c.l.b16 %v141
    %v169 = vunpack.c.l.b16 %v142
    %v170 = vpack.c.b16 %v169, %v168
    %v188 = vunpack.c.l.b16 %v143
    %v189 = vunpack.c.l.b16 %v144
    %v190 = vunpack.c.l.b16 %v145
    %v191 = vunpack.c.l.b16 %v146
    %v192 = vunpack.c.l.b16 %v147
    %v193 = vunpack.c.l.b16 %v148
    %v194 = vunpack.c.l.b16 %v149
    %v195 = vunpack.c.l.b16 %v150
    %v196 = vunpack.c.l.b16 %v151
    %v197 = vunpack.c.l.b16 %v152
    %v198 = vunpack.c.l.b16 %v153
    %v199 = vunpack.c.l.b16 %v154
    %v200 = vunpack.c.l.b16 %v155
    %v201 = vunpack.c.l.b16 %v156
    %v202 = vunpack.c.l.b16 %v157
    %v203 = vunpack.c.l.b16 %v158
    %v204 = vpack.c.b16 %v189, %v188
    %v205 = vpack.c.b16 %v191, %v190
    %v206 = vpack.c.b16 %v193, %v192
    %v207 = vpack.c.b16 %v195, %v194
    %v208 = vpack.c.b16 %v197, %v196
    %v209 = vpack.c.b16 %v199, %v198
    %v210 = vpack.c.b16 %v201, %v200
    %v211 = vpack.c.b16 %v203, %v202
    %220 = vmatprep.subr.bf16.mxu0 0
    %221 = vmatpush1.bf16.msra.mxu0 %v204
    %222 = vmatprep.subr.bf16.mxu0 0
    %223 = vmatpush1.bf16.msra.mxu0 %v205
    %224 = vmatprep.subr.bf16.mxu0 0
    %225 = vmatpush1.bf16.msra.mxu0 %v206
    %226 = vmatprep.subr.bf16.mxu0 0
    %227 = vmatpush1.bf16.msra.mxu0 %v207
    %228 = vmatprep.subr.bf16.mxu0 0
    %229 = vmatpush1.bf16.msra.mxu0 %v208
    %230 = vmatprep.subr.bf16.mxu0 0
    %231 = vmatpush1.bf16.msra.mxu0 %v209
    %232 = vmatprep.subr.bf16.mxu0 0
    %233 = vmatpush1.bf16.msra.mxu0 %v210
    %234 = vmatprep.subr.bf16.mxu0 0
    %235 = vmatpush1.bf16.msra.mxu0 %v211
    %236 = vmatprep.subr.bf16.mxu0 0
    %237 = vmatpush1.bf16.msra.mxu0 0
    %238 = vmatprep.subr.bf16.mxu0 0
    %239 = vmatpush1.bf16.msra.mxu0 0
    %240 = vmatprep.subr.bf16.mxu0 0
    %241 = vmatpush1.bf16.msra.mxu0 0
    %242 = vmatprep.subr.bf16.mxu0 0
    %243 = vmatpush1.bf16.msra.mxu0 0
    %244 = vmatprep.subr.bf16.mxu0 0
    %245 = vmatpush1.bf16.msra.mxu0 0
    %246 = vmatprep.subr.bf16.mxu0 0
    %247 = vmatpush1.bf16.msra.mxu0 0
    %248 = vmatprep.subr.bf16.mxu0 0
    %249 = vmatpush1.bf16.msra.mxu0 0
    %250 = vmatprep.subr.bf16.mxu0 0
    %251 = vmatpush1.bf16.msra.mxu0 0
    %252 = vmatprep.mubr.bf16.mxu0 0
    %253 = vmatmul.mubr.bf16.gmra.mrb[0].mxu0 %v170
    %v254 = vpop.f32.mrb[0].mxu0
    %v255 = vadd.f32 %v164, %v254
    %v256 = vpop.f32.mrb[0].mxu0
    %v257 = vpop.f32.mrb[0].mxu0
    %v258 = vadd.f32 %v164, %v257
    %v259 = vpop.f32.mrb[0].mxu0
    %260 = vdwg.mxu0
    %vm261 = vcmp.ge.f32.partialorder %v255, 0.0
    %vm262 = vcmp.ge.f32.partialorder %v258, 0.0
    %v263 = vmul.f32 %v255, 0.01
    %v264 = vmul.f32 %v258, 0.01
    %v265 = vsel %vm261, %v255, %v263
    %v266 = vsel %vm262, %v258, %v264
    %v267 = vpack.c.bf16 %v266, %v265
    %v268 = vld [vmem:[#allocation7] sm:$0xf]
    %v269 = vld [vmem:[#allocation7 + $0x4] sm:$0xf]
    %v270 = vld [vmem:[#allocation7 + $0x8] sm:$0xf]
    %v271 = vld [vmem:[#allocation7 + $0xc] sm:$0xf]
    %v272 = vld [vmem:[#allocation7 + $0x10] sm:$0xf]
    %v273 = vld [vmem:[#allocation7 + $0x14] sm:$0xf]
    %v274 = vld [vmem:[#allocation7 + $0x18] sm:$0xf]
    %v275 = vld [vmem:[#allocation7 + $0x1c] sm:$0xf]
    %v276 = vld [vmem:[#allocation7 + $0x20] sm:$0xf]
    %v277 = vld [vmem:[#allocation7 + $0x24] sm:$0xf]
    %v278 = vld [vmem:[#allocation7 + $0x28] sm:$0xf]
    %v279 = vld [vmem:[#allocation7 + $0x2c] sm:$0xf]
    %v280 = vld [vmem:[#allocation7 + $0x30] sm:$0xf]
    %v281 = vld [vmem:[#allocation7 + $0x34] sm:$0xf]
    %v282 = vld [vmem:[#allocation7 + $0x38] sm:$0xf]
    %v283 = vld [vmem:[#allocation7 + $0x3c] sm:$0xf]
    %v284 = vld [vmem:[%s4] sm:$0x1]
    %v286 = vlaneseq
    %v287 = vshrl.u32 %v286, 7
    %v288 = vsub.s32 0, %v287
    %v289 = vrot.slane %v284, %v288
    %v307 = vunpack.c.l.b16 %v268
    %v308 = vunpack.c.l.b16 %v269
    %v309 = vunpack.c.l.b16 %v270
    %v310 = vunpack.c.l.b16 %v271
    %v311 = vunpack.c.l.b16 %v272
    %v312 = vunpack.c.l.b16 %v273
    %v313 = vunpack.c.l.b16 %v274
    %v314 = vunpack.c.l.b16 %v275
    %v315 = vunpack.c.l.b16 %v276
    %v316 = vunpack.c.l.b16 %v277
    %v317 = vunpack.c.l.b16 %v278
    %v318 = vunpack.c.l.b16 %v279
    %v319 = vunpack.c.l.b16 %v280
    %v320 = vunpack.c.l.b16 %v281
    %v321 = vunpack.c.l.b16 %v282
    %v322 = vunpack.c.l.b16 %v283
    %v323 = vpack.c.b16 %v308, %v307
    %v324 = vpack.c.b16 %v310, %v309
    %v325 = vpack.c.b16 %v312, %v311
    %v326 = vpack.c.b16 %v314, %v313
    %v327 = vpack.c.b16 %v316, %v315
    %v328 = vpack.c.b16 %v318, %v317
    %v329 = vpack.c.b16 %v320, %v319
    %v330 = vpack.c.b16 %v322, %v321
    %339 = vmatprep.subr.bf16.mxu0 0
    %340 = vmatpush1.bf16.msra.mxu0 %v323
    %341 = vmatprep.subr.bf16.mxu0 0
    %342 = vmatpush1.bf16.msra.mxu0 %v324
    %343 = vmatprep.subr.bf16.mxu0 0
    %344 = vmatpush1.bf16.msra.mxu0 %v325
    %345 = vmatprep.subr.bf16.mxu0 0
    %346 = vmatpush1.bf16.msra.mxu0 %v326
    %347 = vmatprep.subr.bf16.mxu0 0
    %348 = vmatpush1.bf16.msra.mxu0 %v327
    %349 = vmatprep.subr.bf16.mxu0 0
    %350 = vmatpush1.bf16.msra.mxu0 %v328
    %351 = vmatprep.subr.bf16.mxu0 0
    %352 = vmatpush1.bf16.msra.mxu0 %v329
    %353 = vmatprep.subr.bf16.mxu0 0
    %354 = vmatpush1.bf16.msra.mxu0 %v330
    %355 = vmatprep.subr.bf16.mxu0 0
    %356 = vmatpush1.bf16.msra.mxu0 0
    %357 = vmatprep.subr.bf16.mxu0 0
    %358 = vmatpush1.bf16.msra.mxu0 0
    %359 = vmatprep.subr.bf16.mxu0 0
    %360 = vmatpush1.bf16.msra.mxu0 0
    %361 = vmatprep.subr.bf16.mxu0 0
    %362 = vmatpush1.bf16.msra.mxu0 0
    %363 = vmatprep.subr.bf16.mxu0 0
    %364 = vmatpush1.bf16.msra.mxu0 0
    %365 = vmatprep.subr.bf16.mxu0 0
    %366 = vmatpush1.bf16.msra.mxu0 0
    %367 = vmatprep.subr.bf16.mxu0 0
    %368 = vmatpush1.bf16.msra.mxu0 0
    %369 = vmatprep.subr.bf16.mxu0 0
    %370 = vmatpush1.bf16.msra.mxu0 0
    %371 = vmatprep.mubr.bf16.mxu0 0
    %372 = vmatmul.mubr.bf16.gmra.mrb[0].mxu0 %v267
    %v373 = vpop.f32.mrb[0].mxu0
    %v374 = vadd.f32 %v289, %v373
    %v375 = vpop.f32.mrb[0].mxu0
    %v376 = vpop.f32.mrb[0].mxu0
    %v377 = vadd.f32 %v289, %v376
    %v378 = vpop.f32.mrb[0].mxu0
    %379 = vdwg.mxu0
    %vm380 = vcmp.ge.f32.partialorder %v374, 0.0
    %vm381 = vcmp.ge.f32.partialorder %v377, 0.0
    %v382 = vmul.f32 %v374, 0.01
    %v383 = vmul.f32 %v377, 0.01
    %v384 = vsel %vm380, %v374, %v382
    %v385 = vsel %vm381, %v377, %v383
    %v386 = vpack.c.bf16 %v385, %v384
    %v387 = vld [vmem:[#allocation8] sm:$0xf]
    %v388 = vld [vmem:[#allocation8 + $0x4] sm:$0xf]
    %v389 = vld [vmem:[#allocation8 + $0x8] sm:$0xf]
    %v390 = vld [vmem:[#allocation8 + $0xc] sm:$0xf]
    %v391 = vld [vmem:[#allocation8 + $0x10] sm:$0xf]
    %v392 = vld [vmem:[#allocation8 + $0x14] sm:$0xf]
    %v393 = vld [vmem:[#allocation8 + $0x18] sm:$0xf]
    %v394 = vld [vmem:[#allocation8 + $0x1c] sm:$0xf]
    %v395 = vld [vmem:[#allocation8 + $0x20] sm:$0xf]
    %v396 = vld [vmem:[#allocation8 + $0x24] sm:$0xf]
    %v397 = vld [vmem:[#allocation8 + $0x28] sm:$0xf]
    %v398 = vld [vmem:[#allocation8 + $0x2c] sm:$0xf]
    %v399 = vld [vmem:[#allocation8 + $0x30] sm:$0xf]
    %v400 = vld [vmem:[#allocation8 + $0x34] sm:$0xf]
    %v401 = vld [vmem:[#allocation8 + $0x38] sm:$0xf]
    %v402 = vld [vmem:[#allocation8 + $0x3c] sm:$0xf]
    %v403 = vld [vmem:[%s6] sm:$0x1]
    %v405 = vlaneseq
    %v406 = vshrl.u32 %v405, 7
    %v407 = vsub.s32 0, %v406
    %v408 = vrot.slane %v403, %v407
    %v426 = vunpack.c.l.b16 %v387
    %v427 = vunpack.c.l.b16 %v388
    %v428 = vunpack.c.l.b16 %v389
    %v429 = vunpack.c.l.b16 %v390
    %v430 = vunpack.c.l.b16 %v391
    %v431 = vunpack.c.l.b16 %v392
    %v432 = vunpack.c.l.b16 %v393
    %v433 = vunpack.c.l.b16 %v394
    %v434 = vunpack.c.l.b16 %v395
    %v435 = vunpack.c.l.b16 %v396
    %v436 = vunpack.c.l.b16 %v397
    %v437 = vunpack.c.l.b16 %v398
    %v438 = vunpack.c.l.b16 %v399
    %v439 = vunpack.c.l.b16 %v400
    %v440 = vunpack.c.l.b16 %v401
    %v441 = vunpack.c.l.b16 %v402
    %v442 = vpack.c.b16 %v427, %v426
    %v443 = vpack.c.b16 %v429, %v428
    %v444 = vpack.c.b16 %v431, %v430
    %v445 = vpack.c.b16 %v433, %v432
    %v446 = vpack.c.b16 %v435, %v434
    %v447 = vpack.c.b16 %v437, %v436
    %v448 = vpack.c.b16 %v439, %v438
    %v449 = vpack.c.b16 %v441, %v440
    %458 = vmatprep.subr.bf16.mxu0 0
    %459 = vmatpush1.bf16.msra.mxu0 %v442
    %460 = vmatprep.subr.bf16.mxu0 0
    %461 = vmatpush1.bf16.msra.mxu0 %v443
    %462 = vmatprep.subr.bf16.mxu0 0
    %463 = vmatpush1.bf16.msra.mxu0 %v444
    %464 = vmatprep.subr.bf16.mxu0 0
    %465 = vmatpush1.bf16.msra.mxu0 %v445
    %466 = vmatprep.subr.bf16.mxu0 0
    %467 = vmatpush1.bf16.msra.mxu0 %v446
    %468 = vmatprep.subr.bf16.mxu0 0
    %469 = vmatpush1.bf16.msra.mxu0 %v447
    %470 = vmatprep.subr.bf16.mxu0 0
    %471 = vmatpush1.bf16.msra.mxu0 %v448
    %472 = vmatprep.subr.bf16.mxu0 0
    %473 = vmatpush1.bf16.msra.mxu0 %v449
    %474 = vmatprep.subr.bf16.mxu0 0
    %475 = vmatpush1.bf16.msra.mxu0 0
    %476 = vmatprep.subr.bf16.mxu0 0
    %477 = vmatpush1.bf16.msra.mxu0 0
    %478 = vmatprep.subr.bf16.mxu0 0
    %479 = vmatpush1.bf16.msra.mxu0 0
    %480 = vmatprep.subr.bf16.mxu0 0
    %481 = vmatpush1.bf16.msra.mxu0 0
    %482 = vmatprep.subr.bf16.mxu0 0
    %483 = vmatpush1.bf16.msra.mxu0 0
    %484 = vmatprep.subr.bf16.mxu0 0
    %485 = vmatpush1.bf16.msra.mxu0 0
    %486 = vmatprep.subr.bf16.mxu0 0
    %487 = vmatpush1.bf16.msra.mxu0 0
    %488 = vmatprep.subr.bf16.mxu0 0
    %489 = vmatpush1.bf16.msra.mxu0 0
    %490 = vmatprep.mubr.bf16.mxu0 0
    %491 = vmatmul.mubr.bf16.gmra.mrb[0].mxu0 %v386
    %v492 = vpop.f32.mrb[0].mxu0
    %v493 = vadd.f32 %v408, %v492
    %v494 = vpop.f32.mrb[0].mxu0
    %v495 = vpop.f32.mrb[0].mxu0
    %v496 = vadd.f32 %v408, %v495
    %v497 = vpop.f32.mrb[0].mxu0
    %498 = vdwg.mxu0
    %vm499 = vcmp.ge.f32.partialorder %v493, 0.0
    %vm500 = vcmp.ge.f32.partialorder %v496, 0.0
    %v501 = vmul.f32 %v493, 0.01
    %v502 = vmul.f32 %v496, 0.01
    %v503 = vsel %vm499, %v493, %v501
    %v504 = vsel %vm500, %v496, %v502
    %v505 = vpack.c.bf16 %v504, %v503
    %v506 = vld [vmem:[#allocation10] sm:$0xf]
    %v507 = vld [vmem:[#allocation10 + $0x4] sm:$0xf]
    %v508 = vld [vmem:[#allocation10 + $0x8] sm:$0xf]
    %v509 = vld [vmem:[#allocation10 + $0xc] sm:$0xf]
    %v510 = vld [vmem:[#allocation10 + $0x10] sm:$0xf]
    %v511 = vld [vmem:[#allocation10 + $0x14] sm:$0xf]
    %v512 = vld [vmem:[#allocation10 + $0x18] sm:$0xf]
    %v513 = vld [vmem:[#allocation10 + $0x1c] sm:$0xf]
    %v514 = vld [vmem:[#allocation10 + $0x20] sm:$0xf]
    %v515 = vld [vmem:[#allocation10 + $0x24] sm:$0xf]
    %v516 = vld [vmem:[#allocation10 + $0x28] sm:$0xf]
    %v517 = vld [vmem:[#allocation10 + $0x2c] sm:$0xf]
    %v518 = vld [vmem:[#allocation10 + $0x30] sm:$0xf]
    %v519 = vld [vmem:[#allocation10 + $0x34] sm:$0xf]
    %v520 = vld [vmem:[#allocation10 + $0x38] sm:$0xf]
    %v521 = vld [vmem:[#allocation10 + $0x3c] sm:$0xf]
    %v522 = vld [vmem:[%s8] sm:$0x1]
    %v524 = vlaneseq
    %v525 = vshrl.u32 %v524, 7
    %v526 = vsub.s32 0, %v525
    %v527 = vrot.slane %v522, %v526
    %v545 = vunpack.c.l.b16 %v506
    %v546 = vunpack.c.l.b16 %v507
    %v547 = vunpack.c.l.b16 %v508
    %v548 = vunpack.c.l.b16 %v509
    %v549 = vunpack.c.l.b16 %v510
    %v550 = vunpack.c.l.b16 %v511
    %v551 = vunpack.c.l.b16 %v512
    %v552 = vunpack.c.l.b16 %v513
    %v553 = vunpack.c.l.b16 %v514
    %v554 = vunpack.c.l.b16 %v515
    %v555 = vunpack.c.l.b16 %v516
    %v556 = vunpack.c.l.b16 %v517
    %v557 = vunpack.c.l.b16 %v518
    %v558 = vunpack.c.l.b16 %v519
    %v559 = vunpack.c.l.b16 %v520
    %v560 = vunpack.c.l.b16 %v521
    %v561 = vpack.c.b16 %v546, %v545
    %v562 = vpack.c.b16 %v548, %v547
    %v563 = vpack.c.b16 %v550, %v549
    %v564 = vpack.c.b16 %v552, %v551
    %v565 = vpack.c.b16 %v554, %v553
    %v566 = vpack.c.b16 %v556, %v555
    %v567 = vpack.c.b16 %v558, %v557
    %v568 = vpack.c.b16 %v560, %v559
    %577 = vmatprep.subr.bf16.mxu0 0
    %578 = vmatpush1.bf16.msra.mxu0 %v561
    %579 = vmatprep.subr.bf16.mxu0 0
    %580 = vmatpush1.bf16.msra.mxu0 %v562
    %581 = vmatprep.subr.bf16.mxu0 0
    %582 = vmatpush1.bf16.msra.mxu0 %v563
    %583 = vmatprep.subr.bf16.mxu0 0
    %584 = vmatpush1.bf16.msra.mxu0 %v564
    %585 = vmatprep.subr.bf16.mxu0 0
    %586 = vmatpush1.bf16.msra.mxu0 %v565
    %587 = vmatprep.subr.bf16.mxu0 0
    %588 = vmatpush1.bf16.msra.mxu0 %v566
    %589 = vmatprep.subr.bf16.mxu0 0
    %590 = vmatpush1.bf16.msra.mxu0 %v567
    %591 = vmatprep.subr.bf16.mxu0 0
    %592 = vmatpush1.bf16.msra.mxu0 %v568
    %593 = vmatprep.subr.bf16.mxu0 0
    %594 = vmatpush1.bf16.msra.mxu0 0
    %595 = vmatprep.subr.bf16.mxu0 0
    %596 = vmatpush1.bf16.msra.mxu0 0
    %597 = vmatprep.subr.bf16.mxu0 0
    %598 = vmatpush1.bf16.msra.mxu0 0
    %599 = vmatprep.subr.bf16.mxu0 0
    %600 = vmatpush1.bf16.msra.mxu0 0
    %601 = vmatprep.subr.bf16.mxu0 0
    %602 = vmatpush1.bf16.msra.mxu0 0
    %603 = vmatprep.subr.bf16.mxu0 0
    %604 = vmatpush1.bf16.msra.mxu0 0
    %605 = vmatprep.subr.bf16.mxu0 0
    %606 = vmatpush1.bf16.msra.mxu0 0
    %607 = vmatprep.subr.bf16.mxu0 0
    %608 = vmatpush1.bf16.msra.mxu0 0
    %609 = vmatprep.mubr.bf16.mxu0 0
    %610 = vmatmul.mubr.bf16.gmra.mrb[0].mxu0 %v505
    %v611 = vpop.f32.mrb[0].mxu0
    %v612 = vadd.f32 %v527, %v611
    %v613 = vpop.f32.mrb[0].mxu0
    %v614 = vpop.f32.mrb[0].mxu0
    %v615 = vadd.f32 %v527, %v614
    %v616 = vpop.f32.mrb[0].mxu0
    %617 = vdwg.mxu0
    %vm618 = vcmp.ge.f32.partialorder %v612, 0.0
    %vm619 = vcmp.ge.f32.partialorder %v615, 0.0
    %v620 = vmul.f32 %v612, 0.01
    %v621 = vmul.f32 %v615, 0.01
    %v622 = vsel %vm618, %v612, %v620
    %v623 = vsel %vm619, %v615, %v621
    %v624 = vpack.c.bf16 %v623, %v622
    %v625 = vld [vmem:[#allocation11] sm:$0xf]
    %v626 = vld [vmem:[#allocation11 + $0x4] sm:$0xf]
    %v627 = vld [vmem:[#allocation11 + $0x8] sm:$0xf]
    %v628 = vld [vmem:[#allocation11 + $0xc] sm:$0xf]
    %v629 = vld [vmem:[#allocation11 + $0x10] sm:$0xf]
    %v630 = vld [vmem:[#allocation11 + $0x14] sm:$0xf]
    %v631 = vld [vmem:[#allocation11 + $0x18] sm:$0xf]
    %v632 = vld [vmem:[#allocation11 + $0x1c] sm:$0xf]
    %v633 = vld [vmem:[#allocation11 + $0x20] sm:$0xf]
    %v634 = vld [vmem:[#allocation11 + $0x24] sm:$0xf]
    %v635 = vld [vmem:[#allocation11 + $0x28] sm:$0xf]
    %v636 = vld [vmem:[#allocation11 + $0x2c] sm:$0xf]
    %v637 = vld [vmem:[#allocation11 + $0x30] sm:$0xf]
    %v638 = vld [vmem:[#allocation11 + $0x34] sm:$0xf]
    %v639 = vld [vmem:[#allocation11 + $0x38] sm:$0xf]
    %v640 = vld [vmem:[#allocation11 + $0x3c] sm:$0xf]
    %v641 = vld [vmem:[%s10] sm:$0x1]
    %v643 = vlaneseq
    %v644 = vshrl.u32 %v643, 7
    %v645 = vsub.s32 0, %v644
    %v646 = vrot.slane %v641, %v645
    %v664 = vunpack.c.l.b16 %v625
    %v665 = vunpack.c.l.b16 %v626
    %v666 = vunpack.c.l.b16 %v627
    %v667 = vunpack.c.l.b16 %v628
    %v668 = vunpack.c.l.b16 %v629
    %v669 = vunpack.c.l.b16 %v630
    %v670 = vunpack.c.l.b16 %v631
    %v671 = vunpack.c.l.b16 %v632
    %v672 = vunpack.c.l.b16 %v633
    %v673 = vunpack.c.l.b16 %v634
    %v674 = vunpack.c.l.b16 %v635
    %v675 = vunpack.c.l.b16 %v636
    %v676 = vunpack.c.l.b16 %v637
    %v677 = vunpack.c.l.b16 %v638
    %v678 = vunpack.c.l.b16 %v639
    %v679 = vunpack.c.l.b16 %v640
    %v680 = vpack.c.b16 %v665, %v664
    %v681 = vpack.c.b16 %v667, %v666
    %v682 = vpack.c.b16 %v669, %v668
    %v683 = vpack.c.b16 %v671, %v670
    %v684 = vpack.c.b16 %v673, %v672
    %v685 = vpack.c.b16 %v675, %v674
    %v686 = vpack.c.b16 %v677, %v676
    %v687 = vpack.c.b16 %v679, %v678
    %696 = vmatprep.subr.bf16.mxu0 0
    %697 = vmatpush1.bf16.msra.mxu0 %v680
    %698 = vmatprep.subr.bf16.mxu0 0
    %699 = vmatpush1.bf16.msra.mxu0 %v681
    %700 = vmatprep.subr.bf16.mxu0 0
    %701 = vmatpush1.bf16.msra.mxu0 %v682
    %702 = vmatprep.subr.bf16.mxu0 0
    %703 = vmatpush1.bf16.msra.mxu0 %v683
    %704 = vmatprep.subr.bf16.mxu0 0
    %705 = vmatpush1.bf16.msra.mxu0 %v684
    %706 = vmatprep.subr.bf16.mxu0 0
    %707 = vmatpush1.bf16.msra.mxu0 %v685
    %708 = vmatprep.subr.bf16.mxu0 0
    %709 = vmatpush1.bf16.msra.mxu0 %v686
    %710 = vmatprep.subr.bf16.mxu0 0
    %711 = vmatpush1.bf16.msra.mxu0 %v687
    %712 = vmatprep.subr.bf16.mxu0 0
    %713 = vmatpush1.bf16.msra.mxu0 0
    %714 = vmatprep.subr.bf16.mxu0 0
    %715 = vmatpush1.bf16.msra.mxu0 0
    %716 = vmatprep.subr.bf16.mxu0 0
    %717 = vmatpush1.bf16.msra.mxu0 0
    %718 = vmatprep.subr.bf16.mxu0 0
    %719 = vmatpush1.bf16.msra.mxu0 0
    %720 = vmatprep.subr.bf16.mxu0 0
    %721 = vmatpush1.bf16.msra.mxu0 0
    %722 = vmatprep.subr.bf16.mxu0 0
    %723 = vmatpush1.bf16.msra.mxu0 0
    %724 = vmatprep.subr.bf16.mxu0 0
    %725 = vmatpush1.bf16.msra.mxu0 0
    %726 = vmatprep.subr.bf16.mxu0 0
    %727 = vmatpush1.bf16.msra.mxu0 0
    %728 = vmatprep.mubr.bf16.mxu0 0
    %729 = vmatmul.mubr.bf16.gmra.mrb[0].mxu0 %v624
    %v730 = vpop.f32.mrb[0].mxu0
    %v731 = vadd.f32 %v646, %v730
    %v732 = vpop.f32.mrb[0].mxu0
    %v733 = vpop.f32.mrb[0].mxu0
    %v734 = vadd.f32 %v646, %v733
    %v735 = vpop.f32.mrb[0].mxu0
    %736 = vdwg.mxu0
    %vm737 = vcmp.ge.f32.partialorder %v731, 0.0
    %vm738 = vcmp.ge.f32.partialorder %v734, 0.0
    %v739 = vmul.f32 %v731, 0.01
    %v740 = vmul.f32 %v734, 0.01
    %v741 = vsel %vm737, %v731, %v739
    %v742 = vsel %vm738, %v734, %v740
    %v743 = vpack.c.bf16 %v742, %v741
    %v744 = vld [vmem:[#allocation13] sm:$0xf]
    %v745 = vld [vmem:[#allocation13 + $0x4] sm:$0xf]
    %v746 = vld [vmem:[#allocation13 + $0x8] sm:$0xf]
    %v747 = vld [vmem:[#allocation13 + $0xc] sm:$0xf]
    %v748 = vld [vmem:[#allocation13 + $0x10] sm:$0xf]
    %v749 = vld [vmem:[#allocation13 + $0x14] sm:$0xf]
    %v750 = vld [vmem:[#allocation13 + $0x18] sm:$0xf]
    %v751 = vld [vmem:[#allocation13 + $0x1c] sm:$0xf]
    %v752 = vld [vmem:[#allocation13 + $0x20] sm:$0xf]
    %v753 = vld [vmem:[#allocation13 + $0x24] sm:$0xf]
    %v754 = vld [vmem:[#allocation13 + $0x28] sm:$0xf]
    %v755 = vld [vmem:[#allocation13 + $0x2c] sm:$0xf]
    %v756 = vld [vmem:[#allocation13 + $0x30] sm:$0xf]
    %v757 = vld [vmem:[#allocation13 + $0x34] sm:$0xf]
    %v758 = vld [vmem:[#allocation13 + $0x38] sm:$0xf]
    %v759 = vld [vmem:[#allocation13 + $0x3c] sm:$0xf]
    %v760 = vld [vmem:[%s12] sm:$0x1]
    %v762 = vlaneseq
    %v763 = vshrl.u32 %v762, 7
    %v764 = vsub.s32 0, %v763
    %v765 = vrot.slane %v760, %v764
    %v783 = vunpack.c.l.b16 %v744
    %v784 = vunpack.c.l.b16 %v745
    %v785 = vunpack.c.l.b16 %v746
    %v786 = vunpack.c.l.b16 %v747
    %v787 = vunpack.c.l.b16 %v748
    %v788 = vunpack.c.l.b16 %v749
    %v789 = vunpack.c.l.b16 %v750
    %v790 = vunpack.c.l.b16 %v751
    %v791 = vunpack.c.l.b16 %v752
    %v792 = vunpack.c.l.b16 %v753
    %v793 = vunpack.c.l.b16 %v754
    %v794 = vunpack.c.l.b16 %v755
    %v795 = vunpack.c.l.b16 %v756
    %v796 = vunpack.c.l.b16 %v757
    %v797 = vunpack.c.l.b16 %v758
    %v798 = vunpack.c.l.b16 %v759
    %v799 = vpack.c.b16 %v784, %v783
    %v800 = vpack.c.b16 %v786, %v785
    %v801 = vpack.c.b16 %v788, %v787
    %v802 = vpack.c.b16 %v790, %v789
    %v803 = vpack.c.b16 %v792, %v791
    %v804 = vpack.c.b16 %v794, %v793
    %v805 = vpack.c.b16 %v796, %v795
    %v806 = vpack.c.b16 %v798, %v797
    %815 = vmatprep.subr.bf16.mxu0 0
    %816 = vmatpush1.bf16.msra.mxu0 %v799
    %817 = vmatprep.subr.bf16.mxu0 0
    %818 = vmatpush1.bf16.msra.mxu0 %v800
    %819 = vmatprep.subr.bf16.mxu0 0
    %820 = vmatpush1.bf16.msra.mxu0 %v801
    %821 = vmatprep.subr.bf16.mxu0 0
    %822 = vmatpush1.bf16.msra.mxu0 %v802
    %823 = vmatprep.subr.bf16.mxu0 0
    %824 = vmatpush1.bf16.msra.mxu0 %v803
    %825 = vmatprep.subr.bf16.mxu0 0
    %826 = vmatpush1.bf16.msra.mxu0 %v804
    %827 = vmatprep.subr.bf16.mxu0 0
    %828 = vmatpush1.bf16.msra.mxu0 %v805
    %829 = vmatprep.subr.bf16.mxu0 0
    %830 = vmatpush1.bf16.msra.mxu0 %v806
    %831 = vmatprep.subr.bf16.mxu0 0
    %832 = vmatpush1.bf16.msra.mxu0 0
    %833 = vmatprep.subr.bf16.mxu0 0
    %834 = vmatpush1.bf16.msra.mxu0 0
    %835 = vmatprep.subr.bf16.mxu0 0
    %836 = vmatpush1.bf16.msra.mxu0 0
    %837 = vmatprep.subr.bf16.mxu0 0
    %838 = vmatpush1.bf16.msra.mxu0 0
    %839 = vmatprep.subr.bf16.mxu0 0
    %840 = vmatpush1.bf16.msra.mxu0 0
    %841 = vmatprep.subr.bf16.mxu0 0
    %842 = vmatpush1.bf16.msra.mxu0 0
    %843 = vmatprep.subr.bf16.mxu0 0
    %844 = vmatpush1.bf16.msra.mxu0 0
    %845 = vmatprep.subr.bf16.mxu0 0
    %846 = vmatpush1.bf16.msra.mxu0 0
    %847 = vmatprep.mubr.bf16.mxu0 0
    %848 = vmatmul.mubr.bf16.gmra.mrb[0].mxu0 %v743
    %v849 = vpop.f32.mrb[0].mxu0
    %v850 = vadd.f32 %v765, %v849
    %v851 = vpop.f32.mrb[0].mxu0
    %v852 = vpop.f32.mrb[0].mxu0
    %v853 = vadd.f32 %v765, %v852
    %v854 = vpop.f32.mrb[0].mxu0
    %855 = vdwg.mxu0
    %856 = vst [vmem:[#allocation14] sm:$0xff] %v850
    %857 = vst [vmem:[#allocation14 + $0x8] sm:$0xff] %v853
    // Predicated region
    $region82: #{tpu_custom_call.1} parent=1 // pred_check
      _
    $region83: #{tpu_custom_call.1} parent=1 // pred_check_branch
      %859 = sbr.rel (0) target = $region85
    $region84: #{tpu_custom_call.1} parent=1 // pred_region
      %s861 = ssub.s32 256, 256
      %862 = vsyncadd [#allocation4], %s861
      %s863 = sshll.u32 [#allocation14], 4
      %s864 = int_to_ptr.vmem [resolvable:$true] %s863
      %869 = dma.vmem_to_hbm [thread:$0]  %s864, 256, %s13, [#allocation4], 128, 128, 8
    $region85: #{tpu_custom_call.1} parent=1 // pred_fallthru
      _
    // Predicated region
    $region86: #{tpu_custom_call.1} parent=1 // pred_check
      _
    $region87: #{tpu_custom_call.1} parent=1 // pred_check_branch
      %871 = sbr.rel (0) target = $region89
    $region88: #{tpu_custom_call.1} parent=1 // pred_region
      %872 = dma.done [#allocation4], 256
    $region89: #{tpu_custom_call.1} parent=1 // pred_fallthru
      _
    %873 = vsyncpa [#allocation3], 1
    %874 = vsyncpa [#allocation6], 1
    %875 = vsyncpa [#allocation9], 1
    %876 = vsyncpa [#allocation12], 1
    %877 = vsyncpa [#allocation4], 1

</llo_original>
